<compile_context>
chip_gen: v7x
topology: tpu7x:2x2x1
jax: 0.10.0
libtpu: 0.0.40
codegen_flags: <defaults>
</compile_context>

<pallas_src>
import jax
import jax.numpy as jnp
from jax.experimental import pallas as pl
from jax.experimental.pallas import tpu as pltpu


def _make_kernel(compute_dtype):
    def bn2d_kernel(x_ref, scale_ref, bias_ref, o_ref):
        # x_ref / o_ref: (TR, THW) tile; scale_ref / bias_ref: (TR, 1) rows.
        x = x_ref[...].astype(compute_dtype)
        s = scale_ref[...].astype(compute_dtype)   # (TR, 1) broadcasts on lanes
        b = bias_ref[...].astype(compute_dtype)
        # One load, one mul, one add, one store per vreg — pinned to the
        # HBM / vst roofline on every TPU generation.
        o_ref[...] = (x * s + b).astype(o_ref.dtype)

    return bn2d_kernel


def _compute_dtype(x_dtype):
    """bf16-native math on chips with a bf16 VALU; f32 otherwise."""
    if x_dtype != jnp.bfloat16:
        return jnp.float32
    try:
        kind = jax.devices()[0].device_kind.lower()
    except Exception:
        return jnp.float32
    # v5e (and older) have no bf16 VPU — keep f32 accumulate there.
    if "v5" in kind or "v4" in kind or "v3" in kind or "v2" in kind:
        return jnp.float32
    return jnp.bfloat16


def _pick_tiles(rows, HW, itemsize, target_bytes=2 * 1024 * 1024):
    """Pick a (tr, thw) block shape.

    thw: full HW when a minimal-row slab fits the ~2 MiB budget (full-extent
         block dims are always legal), else the largest multiple of 128 that
         fits.
    tr:  multiple of the packed-sublane size (8 f32 / 16 bf16 / 32 int8),
         sized so tr*thw*itemsize ~= 2 MiB, and capped so problems bigger than
         ~1 MiB always produce >= 2 grid steps (v7x megacore).
    Ragged last tiles are handled by pl.cdiv grids — no divisibility needed.
    """
    sub = max(8, 32 // itemsize)        # packed-sublane multiple per dtype
    lane = 128
    tr_min = min(rows, sub)

    # Lane tile.
    if tr_min * HW * itemsize <= target_bytes:
        thw = HW                         # full row on lanes (lane-dense)
    else:
        thw = max(lane, (target_bytes // (tr_min * itemsize)) // lane * lane)
        thw = min(thw, HW)

    if rows <= sub:
        return rows, thw                 # full-extent row dim is always legal

    # Row tile: multiple of sub, sized to the budget, no bigger than needed.
    tr = max(sub, (target_bytes // max(1, thw * itemsize)) // sub * sub)
    tr = min(tr, (-(-rows // sub)) * sub)

    # Keep >= 2 grid steps for problems bigger than ~1 MiB so the "parallel"
    # grid axes actually feed both TensorCores on v7x.
    n_blocks = (-(-rows // tr)) * (-(-HW // thw))
    if n_blocks < 2 and rows * HW * itemsize > target_bytes // 2:
        tr = max(sub, ((-(-rows // 2)) // sub) * sub)

    return tr, thw


def batchnorm2d(x, scale, bias):
    """Frozen BatchNorm2d forward (NCHW):
       x * scale[None, :, None, None] + bias[None, :, None, None]."""
    N, C, H, W = x.shape
    HW = H * W
    rows = N * C
    itemsize = jnp.dtype(x.dtype).itemsize

    # Lane-dense flattened view: rows = (n, c) pairs, lanes = H*W plane.
    # For contiguous NCHW this reshape is a bitcast (no HBM copy).
    x2 = x.reshape(rows, HW)

    # Per-row params: row i = n*C + c -> channel c (i % C). Tiny (N*C, 1) f32.
    scale_rows = jnp.tile(scale, N).reshape(rows, 1).astype(jnp.float32)
    bias_rows = jnp.tile(bias, N).reshape(rows, 1).astype(jnp.float32)

    tr, thw = _pick_tiles(rows, HW, itemsize)
    grid = (pl.cdiv(rows, tr), pl.cdiv(HW, thw))

    out2 = pl.pallas_call(
        _make_kernel(_compute_dtype(x.dtype)),
        out_shape=jax.ShapeDtypeStruct((rows, HW), x.dtype),
        grid=grid,
        in_specs=[
            pl.BlockSpec((tr, thw), lambda i, j: (i, j)),
            pl.BlockSpec((tr, 1), lambda i, j: (i, 0)),
            pl.BlockSpec((tr, 1), lambda i, j: (i, 0)),
        ],
        out_specs=pl.BlockSpec((tr, thw), lambda i, j: (i, j)),
        compiler_params=pltpu.CompilerParams(
            # Both axes are independent (pure elementwise) -> shardable across
            # the two TensorCores on v7x; harmless on single-TC v5e/v6e.
            dimension_semantics=("parallel", "parallel"),
        ),
        cost_estimate=pl.CostEstimate(
            flops=2 * rows * HW,
            bytes_accessed=2 * rows * HW * itemsize + 2 * rows * 4,
            transcendentals=0,
        ),
    )(x2, scale_rows, bias_rows)

    return out2.reshape(N, C, H, W)


if __name__ == "__main__":
    N, C, H, W = 2, 4, 16, 16
    key = jax.random.PRNGKey(0)
    x = jax.random.normal(key, (N, C, H, W), dtype=jnp.float32)

    # Deterministic parameter init matching the module's __init__:
    # scale = ones(C), bias = zeros(C)
    scale = jnp.ones((C,), dtype=jnp.float32)
    bias = jnp.zeros((C,), dtype=jnp.float32)

    out = batchnorm2d(x, scale, bias)
    out = jax.block_until_ready(out)

    # Reference (plain JAX) for correctness check.
    ref = x * scale.reshape(1, -1, 1, 1) + bias.reshape(1, -1, 1, 1)
    assert out.shape == ref.shape and out.dtype == ref.dtype
    assert jnp.allclose(out, ref, atol=1e-6, rtol=1e-6)

    print("KERNEL_OK")
</pallas_src>

<mosaic_0001>
module attributes {stable_mosaic.version = 11 : i64} {
  func.func @bn2d_kernel(%arg0: i32, %arg1: i32, %arg2: memref<8x256xf32, #tpu.memory_space<vmem>>, %arg3: memref<8x1xf32, #tpu.memory_space<vmem>>, %arg4: memref<8x1xf32, #tpu.memory_space<vmem>>, %arg5: memref<8x256xf32, #tpu.memory_space<vmem>>) attributes {dimension_semantics = [#tpu.dimension_semantics<parallel>, #tpu.dimension_semantics<parallel>], iteration_bounds = array<i64: 1, 1>, scalar_prefetch = 0 : i64, scratch_operands = 0 : i64, tpu.core_type = #tpu.core_type<tc>, window_params = [{transform_indices = @transform_0, window_bounds = array<i64: 8, 256>}, {transform_indices = @transform_1, window_bounds = array<i64: 8, 1>}, {transform_indices = @transform_2, window_bounds = array<i64: 8, 1>}, {transform_indices = @transform_3, window_bounds = array<i64: 8, 256>}]} {
    %c0 = arith.constant 0 : index
    %c0_0 = arith.constant 0 : index
    %0 = vector.load %arg2[%c0, %c0_0] : memref<8x256xf32, #tpu.memory_space<vmem>>, vector<8x256xf32>
    %c0_1 = arith.constant 0 : index
    %c0_2 = arith.constant 0 : index
    %1 = vector.load %arg3[%c0_1, %c0_2] : memref<8x1xf32, #tpu.memory_space<vmem>>, vector<8x1xf32>
    %c0_3 = arith.constant 0 : index
    %c0_4 = arith.constant 0 : index
    %2 = vector.load %arg4[%c0_3, %c0_4] : memref<8x1xf32, #tpu.memory_space<vmem>>, vector<8x1xf32>
    %3 = vector.broadcast %1 : vector<8x1xf32> to vector<8x256xf32>
    %4 = arith.mulf %0, %3 : vector<8x256xf32>
    %5 = vector.broadcast %2 : vector<8x1xf32> to vector<8x256xf32>
    %6 = arith.addf %4, %5 : vector<8x256xf32>
    %c0_5 = arith.constant 0 : index
    %c0_6 = arith.constant 0 : index
    %7 = vector.load %arg5[%c0_5, %c0_6] : memref<8x256xf32, #tpu.memory_space<vmem>>, vector<8x256xf32>
    tpu.vector_store %arg5[%c0_5, %c0_6], %6 {strides = array<i32>} : memref<8x256xf32, #tpu.memory_space<vmem>>, vector<8x256xf32>,
    return
  }
  func.func @transform_0(%arg0: i32, %arg1: i32) -> (i32, i32) {
    %c0_i32 = arith.constant 0 : i32
    return %arg0, %arg1 : i32, i32
  }
  func.func @transform_1(%arg0: i32, %arg1: i32) -> (i32, i32) {
    %c0_i32 = arith.constant 0 : i32
    %c0_i32_0 = arith.constant 0 : i32
    return %arg0, %c0_i32 : i32, i32
  }
  func.func @transform_2(%arg0: i32, %arg1: i32) -> (i32, i32) {
    %c0_i32 = arith.constant 0 : i32
    %c0_i32_0 = arith.constant 0 : i32
    return %arg0, %c0_i32 : i32, i32
  }
  func.func @transform_3(%arg0: i32, %arg1: i32) -> (i32, i32) {
    %c0_i32 = arith.constant 0 : i32
    return %arg0, %arg1 : i32, i32
  }
}

</mosaic_0001>

<llo_original>
// kernel: tpu_custom_call.1
$region0: #{tpu_custom_call.1}
  #allocation0 [shape = 'u32[]', space=smem, size = 0x4, offset = 0x4, fixed_abs, tag = 'smem constant byte address 0x4 - core index']
  #allocation1 [shape = 'u32[144,128]{1,0:T(1,128)}', space=vmem, size = 0x12000, scoped, tag = 'internal scratch']
  %s0 = inlined_call_operand.vmem [shape: f32[8,256], index: 0, kind: input, shape index: {}]
  %s1 = inlined_call_operand.vmem [shape: f32[8,1], index: 1, kind: input, shape index: {}]
  %s2 = inlined_call_operand.vmem [shape: f32[8,1], index: 2, kind: input, shape index: {}]
  %s3 = inlined_call_operand.hbm [shape: f32[8,256], index: 3, kind: output, shape index: {}]
  %s4 = sld [smem:[#allocation0]]
  $region22: #{tpu_custom_call.1} parent=0
    _
  %s6 = ssub.s32 1, %s4
  %s7 = scalar_select 0, %s6, %s4
  $region1: #{tpu_custom_call.1} parent=0
    #allocation2 [shape = 'u8[8192]{0}', space=vmem, size = 0x2000, scoped, tag = 'output window, operand 0, single buffered']
    #allocation3 [shape = 's32[1]{0}', space=sflag, size = 0x4, scoped, tag = 'scoped memory for tpu_custom_call.1']
    %8 = vsyncpa [#allocation3], 0
    // Predicated region
    $region2: #{tpu_custom_call.1} parent=1 // pred_check
      _
    $region3: #{tpu_custom_call.1} parent=1 // pred_check_branch
      %10 = sbr.rel (0) target = $region5
    $region4: #{tpu_custom_call.1} parent=1 // pred_region
      _
    $region5: #{tpu_custom_call.1} parent=1 // pred_fallthru
      _
    // Predicated region
    $region6: #{tpu_custom_call.1} parent=1 // pred_check
      _
    $region7: #{tpu_custom_call.1} parent=1 // pred_check_branch
      %12 = sbr.rel (0) target = $region9
    $region8: #{tpu_custom_call.1} parent=1 // pred_region
      _
    $region9: #{tpu_custom_call.1} parent=1 // pred_fallthru
      _
    // Predicated region
    $region10: #{tpu_custom_call.1} parent=1 // pred_check
      _
    $region11: #{tpu_custom_call.1} parent=1 // pred_check_branch
      %14 = sbr.rel (0) target = $region13
    $region12: #{tpu_custom_call.1} parent=1 // pred_region
      _
    $region13: #{tpu_custom_call.1} parent=1 // pred_fallthru
      _
    %v15 = vld [vmem:[%s0] sm:$0xff]
    %v16 = vld [vmem:[%s0 + $0x8] sm:$0xff]
    %v17 = vld [vmem:[%s1] sm:$0xff]
    %v18 = vld [vmem:[%s2] sm:$0xff]
    %20 = vset.pattern.permute.xlu0 0
    %21 = vperm.xlu0 %20, %v17
    %v22 = vpop.permute.xlu0 %21
    %v24 = vmul.f32 %v15, %v22
    %v25 = vmul.f32 %v16, %v22
    %27 = vset.pattern.permute.xlu0 0
    %28 = vperm.xlu0 %27, %v18
    %v29 = vpop.permute.xlu0 %28
    %v31 = vadd.f32 %v24, %v29
    %v32 = vadd.f32 %v25, %v29
    %33 = vst [vmem:[#allocation2] sm:$0xff] %v31
    %34 = vst [vmem:[#allocation2 + $0x8] sm:$0xff] %v32
    // Predicated region
    $region14: #{tpu_custom_call.1} parent=1 // pred_check
      _
    $region15: #{tpu_custom_call.1} parent=1 // pred_check_branch
      %36 = sbr.rel (0) target = $region17
    $region16: #{tpu_custom_call.1} parent=1 // pred_region
      %s38 = ssub.s32 256, 256
      %39 = vsyncadd [#allocation3], %s38
      %s41 = sshll.u32 [#allocation2], 4
      %s42 = int_to_ptr.vmem [resolvable:$true] %s41
      %44 = dma.vmem_to_hbm [thread:$0]  %s42, 256, %s3, [#allocation3]
    $region17: #{tpu_custom_call.1} parent=1 // pred_fallthru
      _
    // Predicated region
    $region18: #{tpu_custom_call.1} parent=1 // pred_check
      _
    $region19: #{tpu_custom_call.1} parent=1 // pred_check_branch
      %46 = sbr.rel (0) target = $region21
    $region20: #{tpu_custom_call.1} parent=1 // pred_region
      %47 = dma.done [#allocation3], 256
    $region21: #{tpu_custom_call.1} parent=1 // pred_fallthru
      _
    %48 = vsyncpa [#allocation3], 1

</llo_original>
